<compile_context>
chip_gen: v5e
topology: v5e:2x2
jax: 0.10.0
libtpu: 0.0.40
codegen_flags: <defaults>
</compile_context>

<pallas_src>
import jax
import jax.numpy as jnp
from jax.experimental import pallas as pl
from jax.experimental.pallas import tpu as pltpu

OBS_DIM = 11      # Reacher observation dim
ACT_DIM = 2       # Reacher action dim
HIDDEN = 64
LANE = 128        # TPU lane width: lane-dense weights
OBS_PAD = 16      # obs weight segment rows padded to an 8-sublane multiple
HID_PAD = 128     # hidden dim padded to a full lane width (zero padding)
W_ROWS = OBS_PAD + 2 * HID_PAD   # 272 rows in the packed weight slab
B_ROWS = 8        # packed bias slab rows (sublane-aligned)


# ----------------------------- Pallas kernel ------------------------------- #
def agent_forward_kernel(obs_ref, w_ref, b_ref, mean_ref, value_ref):
    # Fully fused MLP tile:
    #   obs(TB,11) @ w1(11,128) + b1 -> tanh
    #   -> @ w2(128,128) + b2 -> tanh
    #   -> @ w_head(128,128) + b_head   (lanes 0:2 = mean, lane 2 = value)
    # All matmuls hit the MXU with f32 accumulation; tanh runs on the EUP.
    # Zero padding in the slabs keeps the padded lanes exactly 0 through tanh,
    # and slab rows 11:16 are zero so MXU K-padding of the first dot is inert.
    obs = obs_ref[...]                               # (tb, 11)
    w1 = w_ref[0:OBS_PAD, :][:OBS_DIM]               # aligned 16-row load, trim to 11 real rows
    w2 = w_ref[OBS_PAD:OBS_PAD + HID_PAD, :]         # (128, 128)
    wh = w_ref[OBS_PAD + HID_PAD:W_ROWS, :]          # (128, 128) fused action|value head
    h1 = jnp.tanh(jnp.dot(obs, w1, preferred_element_type=jnp.float32)
                  + b_ref[0:1, :])
    h2 = jnp.tanh(jnp.dot(h1, w2, preferred_element_type=jnp.float32)
                  + b_ref[1:2, :])
    res = (jnp.dot(h2, wh, preferred_element_type=jnp.float32)
           + b_ref[2:3, :])                          # (tb, 128); only lanes 0:3 useful
    # Narrow writebacks: only the useful lanes leave VMEM (12 B/row vs 512 B/row).
    mean_ref[...] = res[:, :ACT_DIM]
    value_ref[...] = res[:, ACT_DIM:ACT_DIM + 1]


def _round_up(x, m):
    return (x + m - 1) // m * m


def agent_forward(obs, packed_params, *, tile_b=4096):
    """obs: (B, OBS_DIM) f32.  packed_params = (w_slab(272,128), b_slab(8,128)).
    Returns (mean_actions (B, ACT_DIM), value (B, 1))."""
    w_slab, b_slab = packed_params
    B = obs.shape[0]
    obs = obs.astype(jnp.float32)

    tb = min(_round_up(tile_b, 8), _round_up(B, 8))
    # v7x has 2 TensorCores: keep >=2 parallel grid steps once B is large.
    if B > 1024 and pl.cdiv(B, tb) < 2:
        tb = _round_up(pl.cdiv(B, 2), 8)
    grid = (pl.cdiv(B, tb),)

    flops = 2 * B * LANE * (OBS_DIM + 2 * HID_PAD)
    bytes_accessed = 4 * (B * OBS_DIM + W_ROWS * LANE + B_ROWS * LANE
                          + B * (ACT_DIM + 1))

    mean, value = pl.pallas_call(
        agent_forward_kernel,
        out_shape=(jax.ShapeDtypeStruct((B, ACT_DIM), jnp.float32),
                   jax.ShapeDtypeStruct((B, 1), jnp.float32)),
        grid_spec=pltpu.PrefetchScalarGridSpec(
            num_scalar_prefetch=0,
            grid=grid,
            in_specs=[
                pl.BlockSpec((tb, OBS_DIM), lambda i: (i, 0)),    # obs streams (no pad copy)
                pl.BlockSpec((W_ROWS, LANE), lambda i: (0, 0)),   # weights pinned in VMEM
                pl.BlockSpec((B_ROWS, LANE), lambda i: (0, 0)),   # biases pinned in VMEM
            ],
            out_specs=[
                pl.BlockSpec((tb, ACT_DIM), lambda i: (i, 0)),    # mean (narrow)
                pl.BlockSpec((tb, 1), lambda i: (i, 0)),          # value (narrow)
            ],
        ),
        compiler_params=pltpu.CompilerParams(
            dimension_semantics=("parallel",)),
        cost_estimate=pl.CostEstimate(
            flops=flops, transcendentals=2 * B * HIDDEN,
            bytes_accessed=bytes_accessed),
    )(obs, w_slab, b_slab)
    return mean, value


# ------------------------ Deterministic parameter init --------------------- #
def orthogonal_init(key, out_features, in_features, gain):
    """Mimics torch.nn.init.orthogonal_ (returns (out, in) matrix)."""
    shape = (out_features, in_features)
    a = jax.random.normal(key, shape, dtype=jnp.float32)
    transposed = shape[0] < shape[1]
    flat = a.T if transposed else a
    q, r = jnp.linalg.qr(flat)
    d = jnp.diag(r)
    q = q * jnp.where(d >= 0, 1.0, -1.0)
    if transposed:
        q = q.T
    return gain * q


def make_params(key):
    k1, k2, k3, k4 = jax.random.split(key, 4)
    tanh_gain = 5.0 / 3.0  # nn.init.calculate_gain('tanh')
    return dict(
        w1=orthogonal_init(k1, HIDDEN, OBS_DIM, tanh_gain),   # (64, 11)
        w2=orthogonal_init(k2, HIDDEN, HIDDEN, tanh_gain),    # (64, 64)
        wa=orthogonal_init(k3, ACT_DIM, HIDDEN, 0.01),        # (2, 64)
        wv=orthogonal_init(k4, 1, HIDDEN, 0.01),              # (1, 64)
        b1=jnp.zeros((HIDDEN,), jnp.float32),
        b2=jnp.zeros((HIDDEN,), jnp.float32),
        ba=jnp.zeros((ACT_DIM,), jnp.float32),
        bv=jnp.zeros((1,), jnp.float32),
        logstd=jnp.zeros((ACT_DIM,), jnp.float32),
    )


def pack_params(p):
    """Pack weights into one (272,128) slab and biases into one (8,128) block.
    Segments sit on 8-sublane boundaries so kernel slices are free views.
    Rows 11:16 of the first segment MUST stay zero (MXU K-padding safety)."""
    w_slab = jnp.zeros((W_ROWS, LANE), jnp.float32)
    w_slab = w_slab.at[:OBS_DIM, :HIDDEN].set(p["w1"].T)                   # (11,64)
    w_slab = w_slab.at[OBS_PAD:OBS_PAD + HIDDEN, :HIDDEN].set(p["w2"].T)   # (64,64)
    head = jnp.concatenate([p["wa"].T, p["wv"].T], axis=1)                 # (64,3)
    w_slab = w_slab.at[OBS_PAD + HID_PAD:OBS_PAD + HID_PAD + HIDDEN,
                       :ACT_DIM + 1].set(head)

    b_slab = jnp.zeros((B_ROWS, LANE), jnp.float32)
    b_slab = b_slab.at[0, :HIDDEN].set(p["b1"])
    b_slab = b_slab.at[1, :HIDDEN].set(p["b2"])
    b_slab = b_slab.at[2, :ACT_DIM + 1].set(jnp.concatenate([p["ba"], p["bv"]]))
    return w_slab, b_slab


def reference_forward(obs, p):
    h1 = jnp.tanh(obs @ p["w1"].T + p["b1"])
    h2 = jnp.tanh(h1 @ p["w2"].T + p["b2"])
    mean = h2 @ p["wa"].T + p["ba"]
    value = h2 @ p["wv"].T + p["bv"]
    std = jnp.exp(p["logstd"])
    return mean, value, std


# TODO(synk): step()/statistics() (Normal sampling, log_prob, entropy) are left
# in plain JAX; for the per-env-step (small-B) path they could be fused into
# this kernel with pltpu.prng_seed/prng_random_bits, passing logstd via b_slab.

if __name__ == "__main__":
    key = jax.random.PRNGKey(0)
    k_obs, k_params = jax.random.split(key)
    BATCH = 40
    obs = jax.random.normal(k_obs, (BATCH, OBS_DIM), dtype=jnp.float32)
    raw = make_params(k_params)
    packed = pack_params(raw)

    # tile_b=16 exercises the batched grid (grid=(3,)) and a partial tail block
    # even at this small size; production default is tile_b=4096.
    mean, value = jax.block_until_ready(agent_forward(obs, packed, tile_b=16))
    # std = exp(logstd) is obs-independent; computed once outside the kernel.
    std = jnp.exp(raw["logstd"])

    mean_ref, value_ref, std_ref = reference_forward(obs, raw)
    assert mean.shape == (BATCH, ACT_DIM) and value.shape == (BATCH, 1)
    assert jnp.allclose(mean, mean_ref, atol=1e-5, rtol=1e-5)
    assert jnp.allclose(value, value_ref, atol=1e-5, rtol=1e-5)
    assert jnp.allclose(std, std_ref, atol=1e-6, rtol=1e-6)
    print("KERNEL_OK")
</pallas_src>

<mosaic_0001>
module attributes {stable_mosaic.version = 11 : i64} {
  func.func @agent_forward_kernel(%arg0: i32, %arg1: memref<16x11xf32, #tpu.memory_space<vmem>>, %arg2: memref<272x128xf32, #tpu.memory_space<vmem>>, %arg3: memref<8x128xf32, #tpu.memory_space<vmem>>, %arg4: memref<16x2xf32, #tpu.memory_space<vmem>>, %arg5: memref<16x1xf32, #tpu.memory_space<vmem>>) attributes {dimension_semantics = [#tpu.dimension_semantics<parallel>], iteration_bounds = array<i64: 3>, scalar_prefetch = 0 : i64, scratch_operands = 0 : i64, tpu.core_type = #tpu.core_type<tc>, window_params = [{transform_indices = @transform_0, window_bounds = array<i64: 16, 11>}, {pipeline_mode = #tpu.pipeline_mode<synchronous>, transform_indices = @transform_1, window_bounds = array<i64: 272, 128>}, {pipeline_mode = #tpu.pipeline_mode<synchronous>, transform_indices = @transform_2, window_bounds = array<i64: 8, 128>}, {transform_indices = @transform_3, window_bounds = array<i64: 16, 2>}, {transform_indices = @transform_4, window_bounds = array<i64: 16, 1>}]} {
    %c0 = arith.constant 0 : index
    %c0_0 = arith.constant 0 : index
    %0 = vector.load %arg1[%c0, %c0_0] : memref<16x11xf32, #tpu.memory_space<vmem>>, vector<16x11xf32>
    %c0_1 = arith.constant 0 : index
    %c0_2 = arith.constant 0 : index
    %1 = vector.load %arg2[%c0_1, %c0_2] : memref<272x128xf32, #tpu.memory_space<vmem>>, vector<16x128xf32>
    %2 = vector.extract_strided_slice %1 {offsets = [0, 0], sizes = [11, 128], strides = [1, 1]} : vector<16x128xf32> to vector<11x128xf32>
    %c16 = arith.constant 16 : index
    %c0_3 = arith.constant 0 : index
    %3 = vector.load %arg2[%c16, %c0_3] : memref<272x128xf32, #tpu.memory_space<vmem>>, vector<128x128xf32>
    %c144 = arith.constant 144 : index
    %c0_4 = arith.constant 0 : index
    %4 = vector.load %arg2[%c144, %c0_4] : memref<272x128xf32, #tpu.memory_space<vmem>>, vector<128x128xf32>
    %cst = arith.constant dense<0.000000e+00> : vector<16x128xf32>
    %5 = tpu.matmul %0, %2, %cst {dimension_numbers = #tpu.dot_dimension_numbers<[1], [0], [0], [1], [0, 0, 1, 1], [], []>} : vector<16x11xf32>, vector<11x128xf32>, vector<16x128xf32> -> vector<16x128xf32>
    %c0_5 = arith.constant 0 : index
    %c0_6 = arith.constant 0 : index
    %6 = vector.load %arg3[%c0_5, %c0_6] : memref<8x128xf32, #tpu.memory_space<vmem>>, vector<1x128xf32>
    %7 = vector.broadcast %6 : vector<1x128xf32> to vector<16x128xf32>
    %8 = arith.addf %5, %7 : vector<16x128xf32>
    %9 = math.tanh %8 : vector<16x128xf32>
    %cst_7 = arith.constant dense<0.000000e+00> : vector<16x128xf32>
    %10 = tpu.matmul %9, %3, %cst_7 {dimension_numbers = #tpu.dot_dimension_numbers<[1], [0], [0], [1], [0, 0, 1, 1], [], []>} : vector<16x128xf32>, vector<128x128xf32>, vector<16x128xf32> -> vector<16x128xf32>
    %c1 = arith.constant 1 : index
    %c0_8 = arith.constant 0 : index
    %11 = vector.load %arg3[%c1, %c0_8] : memref<8x128xf32, #tpu.memory_space<vmem>>, vector<1x128xf32>
    %12 = vector.broadcast %11 : vector<1x128xf32> to vector<16x128xf32>
    %13 = arith.addf %10, %12 : vector<16x128xf32>
    %14 = math.tanh %13 : vector<16x128xf32>
    %cst_9 = arith.constant dense<0.000000e+00> : vector<16x128xf32>
    %15 = tpu.matmul %14, %4, %cst_9 {dimension_numbers = #tpu.dot_dimension_numbers<[1], [0], [0], [1], [0, 0, 1, 1], [], []>} : vector<16x128xf32>, vector<128x128xf32>, vector<16x128xf32> -> vector<16x128xf32>
    %c2 = arith.constant 2 : index
    %c0_10 = arith.constant 0 : index
    %16 = vector.load %arg3[%c2, %c0_10] : memref<8x128xf32, #tpu.memory_space<vmem>>, vector<1x128xf32>
    %17 = vector.broadcast %16 : vector<1x128xf32> to vector<16x128xf32>
    %18 = arith.addf %15, %17 : vector<16x128xf32>
    %19 = vector.extract_strided_slice %18 {offsets = [0, 0], sizes = [16, 2], strides = [1, 1]} : vector<16x128xf32> to vector<16x2xf32>
    %c0_11 = arith.constant 0 : index
    %c0_12 = arith.constant 0 : index
    %20 = vector.load %arg4[%c0_11, %c0_12] : memref<16x2xf32, #tpu.memory_space<vmem>>, vector<16x2xf32>
    tpu.vector_store %arg4[%c0_11, %c0_12], %19 {strides = array<i32>} : memref<16x2xf32, #tpu.memory_space<vmem>>, vector<16x2xf32>,
    %21 = vector.extract_strided_slice %18 {offsets = [0, 2], sizes = [16, 1], strides = [1, 1]} : vector<16x128xf32> to vector<16x1xf32>
    %c0_13 = arith.constant 0 : index
    %c0_14 = arith.constant 0 : index
    %22 = vector.load %arg5[%c0_13, %c0_14] : memref<16x1xf32, #tpu.memory_space<vmem>>, vector<16x1xf32>
    tpu.vector_store %arg5[%c0_13, %c0_14], %21 {strides = array<i32>} : memref<16x1xf32, #tpu.memory_space<vmem>>, vector<16x1xf32>,
    return
  }
  func.func @transform_0(%arg0: i32) -> (i32, i32) {
    %c0_i32 = arith.constant 0 : i32
    %c0_i32_0 = arith.constant 0 : i32
    return %arg0, %c0_i32 : i32, i32
  }
  func.func @transform_1(%arg0: i32) -> (i32, i32) {
    %c0_i32 = arith.constant 0 : i32
    %c0_i32_0 = arith.constant 0 : i32
    %c0_i32_1 = arith.constant 0 : i32
    return %c0_i32, %c0_i32_0 : i32, i32
  }
  func.func @transform_2(%arg0: i32) -> (i32, i32) {
    %c0_i32 = arith.constant 0 : i32
    %c0_i32_0 = arith.constant 0 : i32
    %c0_i32_1 = arith.constant 0 : i32
    return %c0_i32, %c0_i32_0 : i32, i32
  }
  func.func @transform_3(%arg0: i32) -> (i32, i32) {
    %c0_i32 = arith.constant 0 : i32
    %c0_i32_0 = arith.constant 0 : i32
    return %arg0, %c0_i32 : i32, i32
  }
  func.func @transform_4(%arg0: i32) -> (i32, i32) {
    %c0_i32 = arith.constant 0 : i32
    %c0_i32_0 = arith.constant 0 : i32
    return %arg0, %c0_i32 : i32, i32
  }
}

</mosaic_0001>

<llo_original>
// kernel: tpu_custom_call.1
$region0: #{tpu_custom_call.1}
  #allocation0 [shape = 'u32[]', space=smem, size = 0x4, offset = 0x4, fixed_abs, tag = 'smem constant byte address 0x4 - core index']
  #allocation1 [shape = 'u32[72,128]{1,0:T(1,128)}', space=vmem, size = 0x9000, scoped, tag = 'internal scratch']
  %s0 = inlined_call_operand.vmem [shape: f32[40,11], index: 0, kind: input, shape index: {}]
  %s1 = inlined_call_operand.hbm [shape: f32[272,128], index: 1, kind: input, shape index: {}]
  %s2 = inlined_call_operand.vmem [shape: f32[8,128], index: 2, kind: input, shape index: {}]
  %s3 = inlined_call_operand.vmem [shape: f32[40,2], index: 3, kind: output, shape index: {0}]
  %s4 = inlined_call_operand.vmem [shape: f32[40,1], index: 4, kind: output, shape index: {1}]
  %5 = xla_tuple %s3, %s4
  %s6 = sld [smem:[#allocation0]]
  $region153: #{tpu_custom_call.1} parent=0
    _
  %s8 = ssub.s32 1, %s6
  %s9 = scalar_select 0, %s8, %s6
  $region1: #{tpu_custom_call.1} parent=0
    #allocation2 [shape = 'u8[139264]{0}', space=vmem, size = 0x22000, scoped, tag = 'input window, operand 1, single buffered']
    #allocation3 [shape = 's32[2]{0}', space=sflag, size = 0x8, scoped, tag = 'scoped memory for tpu_custom_call.1']
    #allocation4 [shape = 'u8[16384]{0}', space=vmem, size = 0x4000, scoped, tag = 'output window, operand 0']
    #allocation5 [shape = 'u8[16384]{0}', space=vmem, size = 0x4000, scoped, tag = 'output window, operand 1']
    %10 = vsyncpa [#allocation3], 0
    loop: start=0, step=1, limit=5
    $region2: #{tpu_custom_call.1} parent=1 // loop_pre_header
      _
    $region3: #{tpu_custom_call.1} parent=1 // loop_header
      %s12 = sphi 0, %s16
      %p13 = scmp.ge.s32.totalorder %s12, 5
      %s22 = sphi 0, %s24
      %s25 = sphi 0, %s22
      %s26 = sphi 0, %s25
      %s42 = sphi 0, %s26
      %s46 = sphi 0, %s46
      %s48 = sphi 0, %s46
      %s49 = sphi 0, %s48
      %s63 = sphi 0, %s49
      %s67 = sphi 0, %s67
      %s69 = sphi 0, %s67
      %s70 = sphi 0, %s69
      %s84 = sphi 0, %s70
      %s90 = sphi 0, %s92
      %s93 = sphi 0, %s90
      %s94 = sphi 0, %s93
      %s110 = sphi 0, %s94
      %s116 = sphi 0, %s118
      %s119 = sphi 0, %s116
      %s120 = sphi 0, %s119
      %s136 = sphi 0, %s120
    $region4: #{tpu_custom_call.1} parent=1 // loop_header_branch
      %15 = sbr.rel (%p13) target = $region8
    $region5: #{tpu_custom_call.1} parent=1 // loop_body
      %s17 = ssub.s32 %s12, 1
      %s18 = ssub.s32 %s12, 2
      %s19 = sadd.s32 %s12, 1
      %s20 = ssub.s32 %s12, %s19
      %p21 = scmp.eq.s32.totalorder %s20, 0
      %s23 = sadd.s32 %s22, 1
      %s24 = scalar_select %p21, %s22, %s23
      %p27 = pneg %p21
      %p28 = scmp.eq.s32.totalorder %s12, 2
      %p29 = por %p27, %p28
      %p30 = scmp.ne.s32.totalorder %s22, %s25
      %p31 = scmp.eq.s32.totalorder %s12, 0
      %p32 = por %p30, %p31
      %p33 = scmp.ne.s32.totalorder %s22, %s25
      %p34 = scmp.eq.s32.totalorder %s17, 2
      %p35 = por %p33, %p34
      %p36 = scmp.ne.s32.totalorder %s25, %s26
      %p37 = scmp.eq.s32.totalorder %s17, 0
      %p38 = por %p36, %p37
      %p39 = scmp.ne.s32.totalorder %s25, %s26
      %p40 = scmp.eq.s32.totalorder %s18, 2
      %p41 = por %p39, %p40
      %p43 = scmp.ne.s32.totalorder %s26, %s42
      %p44 = scmp.eq.s32.totalorder %s18, 0
      %p45 = por %p43, %p44
      %s47 = sadd.s32 %s46, 1
      %p50 = scmp.eq.s32.totalorder %s12, 2
      %p51 = scmp.ne.s32.totalorder %s46, %s48
      %p52 = scmp.eq.s32.totalorder %s12, 0
      %p53 = por %p51, %p52
      %p54 = scmp.ne.s32.totalorder %s46, %s48
      %p55 = scmp.eq.s32.totalorder %s17, 2
      %p56 = por %p54, %p55
      %p57 = scmp.ne.s32.totalorder %s48, %s49
      %p58 = scmp.eq.s32.totalorder %s17, 0
      %p59 = por %p57, %p58
      %p60 = scmp.ne.s32.totalorder %s48, %s49
      %p61 = scmp.eq.s32.totalorder %s18, 2
      %p62 = por %p60, %p61
      %p64 = scmp.ne.s32.totalorder %s49, %s63
      %p65 = scmp.eq.s32.totalorder %s18, 0
      %p66 = por %p64, %p65
      %s68 = sadd.s32 %s67, 1
      %p71 = scmp.eq.s32.totalorder %s12, 2
      %p72 = scmp.ne.s32.totalorder %s67, %s69
      %p73 = scmp.eq.s32.totalorder %s12, 0
      %p74 = por %p72, %p73
      %p75 = scmp.ne.s32.totalorder %s67, %s69
      %p76 = scmp.eq.s32.totalorder %s17, 2
      %p77 = por %p75, %p76
      %p78 = scmp.ne.s32.totalorder %s69, %s70
      %p79 = scmp.eq.s32.totalorder %s17, 0
      %p80 = por %p78, %p79
      %p81 = scmp.ne.s32.totalorder %s69, %s70
      %p82 = scmp.eq.s32.totalorder %s18, 2
      %p83 = por %p81, %p82
      %p85 = scmp.ne.s32.totalorder %s70, %s84
      %p86 = scmp.eq.s32.totalorder %s18, 0
      %p87 = por %p85, %p86
      %s88 = ssub.s32 %s12, %s19
      %p89 = scmp.eq.s32.totalorder %s88, 0
      %s91 = sadd.s32 %s90, 1
      %s92 = scalar_select %p89, %s90, %s91
      %p95 = pneg %p89
      %p96 = scmp.eq.s32.totalorder %s12, 2
      %p97 = por %p95, %p96
      %p98 = scmp.ne.s32.totalorder %s90, %s93
      %p99 = scmp.eq.s32.totalorder %s12, 0
      %p100 = por %p98, %p99
      %p101 = scmp.ne.s32.totalorder %s90, %s93
      %p102 = scmp.eq.s32.totalorder %s17, 2
      %p103 = por %p101, %p102
      %p104 = scmp.ne.s32.totalorder %s93, %s94
      %p105 = scmp.eq.s32.totalorder %s17, 0
      %p106 = por %p104, %p105
      %p107 = scmp.ne.s32.totalorder %s93, %s94
      %p108 = scmp.eq.s32.totalorder %s18, 2
      %p109 = por %p107, %p108
      %p111 = scmp.ne.s32.totalorder %s94, %s110
      %p112 = scmp.eq.s32.totalorder %s18, 0
      %p113 = por %p111, %p112
      %s114 = ssub.s32 %s12, %s19
      %p115 = scmp.eq.s32.totalorder %s114, 0
      %s117 = sadd.s32 %s116, 1
      %s118 = scalar_select %p115, %s116, %s117
      %p121 = pneg %p115
      %p122 = scmp.eq.s32.totalorder %s12, 2
      %p123 = por %p121, %p122
      %p124 = scmp.ne.s32.totalorder %s116, %s119
      %p125 = scmp.eq.s32.totalorder %s12, 0
      %p126 = por %p124, %p125
      %p127 = scmp.ne.s32.totalorder %s116, %s119
      %p128 = scmp.eq.s32.totalorder %s17, 2
      %p129 = por %p127, %p128
      %p130 = scmp.ne.s32.totalorder %s119, %s120
      %p131 = scmp.eq.s32.totalorder %s17, 0
      %p132 = por %p130, %p131
      %p133 = scmp.ne.s32.totalorder %s119, %s120
      %p134 = scmp.eq.s32.totalorder %s18, 2
      %p135 = por %p133, %p134
      %p137 = scmp.ne.s32.totalorder %s120, %s136
      %p138 = scmp.eq.s32.totalorder %s18, 0
      %p139 = por %p137, %p138
      %p140 = scmp.le.s32.totalorder 1, %s12
      %p141 = scmp.lt.s32.totalorder %s12, 4
      %p142 = pnand %p140, %p141
      %p143 = pneg %p142
      // Predicated region
      $region9: #{tpu_custom_call.1} parent=5 // pred_check
        _
      $region10: #{tpu_custom_call.1} parent=5 // pred_check_branch
        %145 = sbr.rel (%p142) target = $region12
      $region11: #{tpu_custom_call.1} parent=5 // pred_region
        %s146 = ssub.s32 %s12, 1
        // Predicated region
        $region13: #{tpu_custom_call.1} parent=11 // pred_check
          %p147 = pneg %p59
        $region14: #{tpu_custom_call.1} parent=11 // pred_check_branch
          %149 = sbr.rel (%p147) target = $region16
        $region15: #{tpu_custom_call.1} parent=11 // pred_region
          %151 = vsyncadd [#allocation3], 0
          %s152 = sshll.u32 %s1, 4
          %s153 = int_to_ptr.hbm [resolvable:$true] %s152
          %s154 = sshll.u32 [#allocation2], 4
          %s155 = int_to_ptr.vmem [resolvable:$true] %s154
          %160 = dma.hbm_to_vmem [thread:$0]  %s153, 4352, %s155, [#allocation3], 128, 128, 8
        $region16: #{tpu_custom_call.1} parent=11 // pred_fallthru
          _
        // Predicated region
        $region17: #{tpu_custom_call.1} parent=11 // pred_check
          %p161 = pneg %p80
        $region18: #{tpu_custom_call.1} parent=11 // pred_check_branch
          %163 = sbr.rel (%p161) target = $region20
        $region19: #{tpu_custom_call.1} parent=11 // pred_region
          _
        $region20: #{tpu_custom_call.1} parent=11 // pred_fallthru
          _
      $region12: #{tpu_custom_call.1} parent=5 // pred_fallthru
        _
      %p164 = scmp.lt.s32.totalorder %s12, 3
      // Predicated region
      $region21: #{tpu_custom_call.1} parent=5 // pred_check
        %p165 = pneg %p164
      $region22: #{tpu_custom_call.1} parent=5 // pred_check_branch
        %167 = sbr.rel (%p165) target = $region24
      $region23: #{tpu_custom_call.1} parent=5 // pred_region
        // Predicated region
        $region25: #{tpu_custom_call.1} parent=23 // pred_check
          %p168 = pneg %p32
        $region26: #{tpu_custom_call.1} parent=23 // pred_check_branch
          %170 = sbr.rel (%p168) target = $region28
        $region27: #{tpu_custom_call.1} parent=23 // pred_region
          %s171 = smul.u32 2, %s12
          %s172 = ssub.s32 5, %s171
          %p173 = scmp.lt.s32.totalorder %s172, 2
          %s174 = scalar_select %p173, %s172, 2
          %s175 = smul.u32 8, %s174
          %p176 = scmp.lt.s32.totalorder %s171, 4
          %s177 = scalar_select %p176, %s171, 4
          %s178 = smul.addr %s177, 8
          %s179 = scalar_lea.vmem %s0, %s178
          %s180 = smul.u32 2, %s12
          %s181 = ssub.s32 5, %s180
          %p182 = scmp.lt.s32.totalorder %s181, 2
          %s183 = scalar_select %p182, %s181, 2
          %s184 = smul.u32 8, %s183
        $region28: #{tpu_custom_call.1} parent=23 // pred_fallthru
          _
      $region24: #{tpu_custom_call.1} parent=5 // pred_fallthru
        _
      %p185 = scmp.le.s32.totalorder 1, %s12
      %p186 = scmp.lt.s32.totalorder %s12, 4
      %p187 = pnand %p185, %p186
      %p188 = pneg %p187
      // Predicated region
      $region29: #{tpu_custom_call.1} parent=5 // pred_check
        _
      $region30: #{tpu_custom_call.1} parent=5 // pred_check_branch
        %190 = sbr.rel (%p187) target = $region32
      $region31: #{tpu_custom_call.1} parent=5 // pred_region
        %s191 = ssub.s32 %s12, 1
        // Predicated region
        $region33: #{tpu_custom_call.1} parent=31 // pred_check
          %p192 = pneg %p59
        $region34: #{tpu_custom_call.1} parent=31 // pred_check_branch
          %194 = sbr.rel (%p192) target = $region36
        $region35: #{tpu_custom_call.1} parent=31 // pred_region
          %196 = dma.done [#allocation3], 4352
        $region36: #{tpu_custom_call.1} parent=31 // pred_fallthru
          _
        %s197 = smul.u32 2, %s17
        %s198 = ssub.s32 5, %s197
        %p199 = scmp.lt.s32.totalorder %s198, 2
        %s200 = scalar_select %p199, %s198, 2
        %s201 = smul.u32 8, %s200
        %p202 = scmp.lt.s32.totalorder %s197, 4
        %s203 = scalar_select %p202, %s197, 4
        %s204 = smul.addr %s203, 8
        %s205 = scalar_lea.vmem %s0, %s204
        %p206 = pneg %p38
        %p207 = pneg %p35
        %p208 = pneg %p59
        %p209 = pneg %p56
        %p210 = pneg %p80
        %p211 = pneg %p77
        %p212 = pneg %p106
        %p213 = pneg %p103
        %s214 = sand.u32 %s93, 1
        %s215 = sand.u32 %s93, 1
        %s216 = smul.addr %s215, 16
        %s217 = scalar_lea.vmem [#allocation4], %s216
        %p218 = pneg %p132
        %p219 = pneg %p129
        %s220 = sand.u32 %s119, 1
        %s221 = sand.u32 %s119, 1
        %s222 = smul.addr %s221, 16
        %s223 = scalar_lea.vmem [#allocation5], %s222
        %s224 = smul.u32 2, %s17
        %s225 = ssub.s32 5, %s224
        %p226 = scmp.lt.s32.totalorder %s225, 2
        %s227 = scalar_select %p226, %s225, 2
        %s228 = smul.u32 8, %s227
        %p229 = scmp.lt.s32.totalorder %s224, 4
        %s230 = scalar_select %p229, %s224, 4
        %s231 = smul.addr %s230, 8
        %s232 = scalar_lea.vmem %s0, %s231
        %s233 = smul.u32 2, %s17
        %s234 = ssub.s32 5, %s233
        %p235 = scmp.lt.s32.totalorder %s234, 2
        %s236 = scalar_select %p235, %s234, 2
        %s237 = smul.u32 8, %s236
        %s238 = smul.u32 2, %s17
        %s239 = ssub.s32 5, %s238
        %p240 = scmp.lt.s32.totalorder %s239, 2
        %s241 = scalar_select %p240, %s239, 2
        %s242 = smul.u32 8, %s241
        %s243 = smul.u32 2, %s17
        %s244 = ssub.s32 5, %s243
        %p245 = scmp.lt.s32.totalorder %s244, 2
        %s246 = scalar_select %p245, %s244, 2
        %s247 = smul.u32 8, %s246
        %v248 = vld [vmem:[%s232] sm:$0xff]
        %v249 = vld [vmem:[%s232 + $0x8] sm:$0xff]
        %v250 = vld [vmem:[#allocation2] sm:$0xff]
        %v251 = vld [vmem:[#allocation2 + $0x8] sm:$0xff]
        %v252 = vld [vmem:[#allocation2 + $0x10] sm:$0xff]
        %v253 = vld [vmem:[#allocation2 + $0x18] sm:$0xff]
        %v254 = vld [vmem:[#allocation2 + $0x20] sm:$0xff]
        %v255 = vld [vmem:[#allocation2 + $0x28] sm:$0xff]
        %v256 = vld [vmem:[#allocation2 + $0x30] sm:$0xff]
        %v257 = vld [vmem:[#allocation2 + $0x38] sm:$0xff]
        %v258 = vld [vmem:[#allocation2 + $0x40] sm:$0xff]
        %v259 = vld [vmem:[#allocation2 + $0x48] sm:$0xff]
        %v260 = vld [vmem:[#allocation2 + $0x50] sm:$0xff]
        %v261 = vld [vmem:[#allocation2 + $0x58] sm:$0xff]
        %v262 = vld [vmem:[#allocation2 + $0x60] sm:$0xff]
        %v263 = vld [vmem:[#allocation2 + $0x68] sm:$0xff]
        %v264 = vld [vmem:[#allocation2 + $0x70] sm:$0xff]
        %v265 = vld [vmem:[#allocation2 + $0x78] sm:$0xff]
        %v266 = vld [vmem:[#allocation2 + $0x80] sm:$0xff]
        %v267 = vld [vmem:[#allocation2 + $0x88] sm:$0xff]
        %v268 = vld [vmem:[#allocation2 + $0x90] sm:$0xff]
        %v269 = vld [vmem:[#allocation2 + $0x98] sm:$0xff]
        %v270 = vld [vmem:[#allocation2 + $0xa0] sm:$0xff]
        %v271 = vld [vmem:[#allocation2 + $0xa8] sm:$0xff]
        %v272 = vld [vmem:[#allocation2 + $0xb0] sm:$0xff]
        %v273 = vld [vmem:[#allocation2 + $0xb8] sm:$0xff]
        %v274 = vld [vmem:[#allocation2 + $0xc0] sm:$0xff]
        %v275 = vld [vmem:[#allocation2 + $0xc8] sm:$0xff]
        %v276 = vld [vmem:[#allocation2 + $0xd0] sm:$0xff]
        %v277 = vld [vmem:[#allocation2 + $0xd8] sm:$0xff]
        %v278 = vld [vmem:[#allocation2 + $0xe0] sm:$0xff]
        %v279 = vld [vmem:[#allocation2 + $0xe8] sm:$0xff]
        %v280 = vld [vmem:[#allocation2 + $0xf0] sm:$0xff]
        %v281 = vld [vmem:[#allocation2 + $0xf8] sm:$0xff]
        %v282 = vld [vmem:[#allocation2 + $0x100] sm:$0xff]
        %v283 = vld [vmem:[#allocation2 + $0x108] sm:$0xff]
        %v284 = vld [vmem:[%s2] sm:$0x1]
        %v285 = vperm.slane %v284, 0
        %vm286 = vcmask 89088
        %v288 = vsel %vm286, %v248, 0
        %v291 = vsel %vm286, %v249, 0
        %vm293 = vcmask 1042432
        %v295 = vsel %vm293, %v251, 0
        %297 = vmatpush.msra.mxu0 0.0
        %298 = vmatpush.msra.mxu0 0.0
        %299 = vmatpush.msra.mxu0 0.0
        %300 = vmatpush.msra.mxu0 0.0
        %301 = vmatpush.msra.mxu0 0.0
        %302 = vmatpush.msra.mxu0 0.0
        %303 = vmatpush.msra.mxu0 0.0
        %304 = vmatpush.msra.mxu0 0.0
        %305 = vmatpush.msra.mxu0 0.0
        %306 = vmatpush.msra.mxu0 0.0
        %307 = vmatpush.msra.mxu0 0.0
        %308 = vmatpush.msra.mxu0 0.0
        %309 = vmatpush.msra.mxu0 0.0
        %310 = vmatpush.msra.mxu0 0.0
        %311 = vmatpush.msra.mxu0 %v295
        %312 = vmatpush.msra.mxu0 %v250
        %313 = vmatmul.f32.gmra.mxu0 %v288
        %v314 = vpop.f32.mrf.mxu0
        %v315 = vadd.f32 %v285, %v314
        %316 = vmatmul.f32.gmra.mxu0 %v291
        %v317 = vpop.f32.mrf.mxu0
        %v318 = vadd.f32 %v285, %v317
        %319 = vdwg.mxu0
        %v320 = vtanh.pop %v315
        %v321 = vtanh.pop %v318
        %v322 = vld [vmem:[%s2 + $0x1] sm:$0x1]
        %v323 = vperm.slane %v322, 0
        %324 = vmatpush.msra.mxu0 %v267
        %325 = vmatpush.msra.mxu0 %v266
        %326 = vmatpush.msra.mxu0 %v265
        %327 = vmatpush.msra.mxu0 %v264
        %328 = vmatpush.msra.mxu0 %v263
        %329 = vmatpush.msra.mxu0 %v262
        %330 = vmatpush.msra.mxu0 %v261
        %331 = vmatpush.msra.mxu0 %v260
        %332 = vmatpush.msra.mxu0 %v259
        %333 = vmatpush.msra.mxu0 %v258
        %334 = vmatpush.msra.mxu0 %v257
        %335 = vmatpush.msra.mxu0 %v256
        %336 = vmatpush.msra.mxu0 %v255
        %337 = vmatpush.msra.mxu0 %v254
        %338 = vmatpush.msra.mxu0 %v253
        %339 = vmatpush.msra.mxu0 %v252
        %340 = vmatmul.f32.gmra.mxu0 %v320
        %v341 = vpop.f32.mrf.mxu0
        %v342 = vadd.f32 %v323, %v341
        %343 = vmatmul.f32.gmra.mxu0 %v321
        %v344 = vpop.f32.mrf.mxu0
        %v345 = vadd.f32 %v323, %v344
        %346 = vdwg.mxu0
        %v347 = vtanh.pop %v342
        %v348 = vtanh.pop %v345
        %v349 = vld [vmem:[%s2 + $0x2] sm:$0x1]
        %v350 = vperm.slane %v349, 0
        %351 = vmatpush.msra.mxu0 %v283
        %352 = vmatpush.msra.mxu0 %v282
        %353 = vmatpush.msra.mxu0 %v281
        %354 = vmatpush.msra.mxu0 %v280
        %355 = vmatpush.msra.mxu0 %v279
        %356 = vmatpush.msra.mxu0 %v278
        %357 = vmatpush.msra.mxu0 %v277
        %358 = vmatpush.msra.mxu0 %v276
        %359 = vmatpush.msra.mxu0 %v275
        %360 = vmatpush.msra.mxu0 %v274
        %361 = vmatpush.msra.mxu0 %v273
        %362 = vmatpush.msra.mxu0 %v272
        %363 = vmatpush.msra.mxu0 %v271
        %364 = vmatpush.msra.mxu0 %v270
        %365 = vmatpush.msra.mxu0 %v269
        %366 = vmatpush.msra.mxu0 %v268
        %367 = vmatmul.f32.gmra.mxu0 %v347
        %v368 = vpop.f32.mrf.mxu0
        %v369 = vadd.f32 %v350, %v368
        %370 = vmatmul.f32.gmra.mxu0 %v348
        %v371 = vpop.f32.mrf.mxu0
        %v372 = vadd.f32 %v350, %v371
        %373 = vdwg.mxu0
        %vm374 = vcmask 15360
        %375 = vst.msk [vmem:[%s217] sm:$0xff] %vm374, %v369
        %376 = vst.msk [vmem:[%s217 + $0x8] sm:$0xff] %vm374, %v372
        %379 = vrot.lane.b32.xlu0 %v369, 126
        %v380 = vpop.permute.xlu0 %379
        %381 = vrot.lane.b32.xlu0 %v372, 126
        %v382 = vpop.permute.xlu0 %381
        %vm385 = vcmask 7168
        %386 = vst.msk [vmem:[%s223] sm:$0xff] %vm385, %v380
        %387 = vst.msk [vmem:[%s223 + $0x8] sm:$0xff] %vm385, %v382
        %s388 = sand.u32 %s93, 1
        %s389 = sand.u32 %s93, 1
        %s390 = smul.addr %s389, 16
        %s391 = scalar_lea.vmem [#allocation4], %s390
        %s392 = sand.u32 %s119, 1
        %s393 = sand.u32 %s119, 1
        %s394 = smul.addr %s393, 16
        %s395 = scalar_lea.vmem [#allocation5], %s394
        // Predicated region
        $region37: #{tpu_custom_call.1} parent=31 // pred_check
          %p396 = pneg %p103
        $region38: #{tpu_custom_call.1} parent=31 // pred_check_branch
          %398 = sbr.rel (%p396) target = $region40
        $region39: #{tpu_custom_call.1} parent=31 // pred_region
          %s399 = smul.u32 2, %s17
          %s400 = ssub.s32 5, %s399
          %p401 = scmp.lt.s32.totalorder %s400, 2
          %s402 = scalar_select %p401, %s400, 2
          %s403 = smul.u32 8, %s402
          %p404 = scmp.ne.s32.totalorder 0, %s403
          %s405 = smul.addr %s399, 8
          %s406 = scalar_lea.vmem %s3, %s405
          // Predicated region
          $region41: #{tpu_custom_call.1} parent=39 // pred_check
            %p407 = pneg %p404
          $region42: #{tpu_custom_call.1} parent=39 // pred_check_branch
            %409 = sbr.rel (%p407) target = $region44
          $region43: #{tpu_custom_call.1} parent=39 // pred_region
            // Predicated region
            $region45: #{tpu_custom_call.1} parent=43 // pred_check
              _
            $region46: #{tpu_custom_call.1} parent=43 // pred_check_branch
              %411 = sbr.rel (0) target = $region48
            $region47: #{tpu_custom_call.1} parent=43 // pred_region
              // Predicated region
              $region67: #{tpu_custom_call.1} parent=47 // pred_check
                _
              $region68: #{tpu_custom_call.1} parent=47 // pred_check_branch
                %463 = sbr.rel (0) target = $region70
              $region69: #{tpu_custom_call.1} parent=47 // pred_region
                %s464 = sshrl.u32 %s402, 1
                // While loop
                $region71: #{tpu_custom_call.1} parent=69 // loop_pre_header
                  _
                $region72: #{tpu_custom_call.1} parent=69 // loop_header
                  %s466 = sphi 0, %s468
                  %p467 = scmp.ge.s32.totalorder %s466, %s464
                  %s471 = sphi 0, %s480
                  %s472 = sphi %s391, %s483
                  %s473 = sphi %s406, %s484
                $region73: #{tpu_custom_call.1} parent=69 // loop_header_branch
                  %470 = sbr.rel (%p467) target = $region77
                $region74: #{tpu_custom_call.1} parent=69 // loop_body
                  %v474 = vld [vmem:[%s472] sm:$0xff]
                  %475 = vst [vmem:[%s473] sm:$0xff] %v474
                  %v476 = vld [vmem:[%s472 + $0x8] sm:$0xff]
                  %477 = vst [vmem:[%s473 + $0x8] sm:$0xff] %v476
                  %s478 = sadd.s32 1, %s471
                  %p479 = scmp.ge.s32.totalorder %s478, %s464
                  %s480 = scalar_select %p479, 0, %s478
                  %s481 = smul.u32 %s480, 16
                  %s482 = smul.u32 %s480, 16
                  %s483 = scalar_lea.vmem %s391, %s481 [#allocation4]
                  %s484 = scalar_lea.vmem %s406, %s482
                $region75: #{tpu_custom_call.1} parent=69 // loop_footer
                  %s468 = sadd.s32 %s466, 1
                $region76: #{tpu_custom_call.1} parent=69 // loop_footer_branch
                  %465 = sbr.rel target = $region72
                $region77: #{tpu_custom_call.1} parent=69 // loop_exit
                  _
                %s485 = sshrl.u32 %s402, 1
                %s486 = sand.u32 %s402, 1
                %s487 = smul.u32 %s485, 2
                %s488 = smul.u32 8, %s487
                %s489 = scalar_lea.vmem %s391, %s488 [#allocation4]
                %s490 = smul.u32 8, %s487
                %s491 = scalar_lea.vmem %s406, %s490
                // While loop
                $region78: #{tpu_custom_call.1} parent=69 // loop_pre_header
                  _
                $region79: #{tpu_custom_call.1} parent=69 // loop_header
                  %s493 = sphi 0, %s495
                  %p494 = scmp.ge.s32.totalorder %s493, %s486
                  %s498 = sphi 0, %s505
                  %s499 = sphi %s489, %s508
                  %s500 = sphi %s491, %s509
                $region80: #{tpu_custom_call.1} parent=69 // loop_header_branch
                  %497 = sbr.rel (%p494) target = $region84
                $region81: #{tpu_custom_call.1} parent=69 // loop_body
                  %v501 = vld [vmem:[%s499] sm:$0xff]
                  %502 = vst [vmem:[%s500] sm:$0xff] %v501
                  %s503 = sadd.s32 1, %s498
                  %p504 = scmp.ge.s32.totalorder %s503, %s486
                  %s505 = scalar_select %p504, 0, %s503
                  %s506 = smul.u32 %s505, 8
                  %s507 = smul.u32 %s505, 8
                  %s508 = scalar_lea.vmem %s489, %s506 [#allocation4]
                  %s509 = scalar_lea.vmem %s491, %s507
                $region82: #{tpu_custom_call.1} parent=69 // loop_footer
                  %s495 = sadd.s32 %s493, 1
                $region83: #{tpu_custom_call.1} parent=69 // loop_footer_branch
                  %492 = sbr.rel target = $region79
                $region84: #{tpu_custom_call.1} parent=69 // loop_exit
                  _
              $region70: #{tpu_custom_call.1} parent=47 // pred_fallthru
                _
              // Predicated region
              $region85: #{tpu_custom_call.1} parent=47 // pred_check
                _
              $region86: #{tpu_custom_call.1} parent=47 // pred_check_branch
                %511 = sbr.rel target = $region88
              $region87: #{tpu_custom_call.1} parent=47 // pred_region
                _
              $region88: #{tpu_custom_call.1} parent=47 // pred_fallthru
                _
            $region48: #{tpu_custom_call.1} parent=43 // pred_fallthru
              _
            // Predicated region
            $region49: #{tpu_custom_call.1} parent=43 // pred_check
              _
            $region50: #{tpu_custom_call.1} parent=43 // pred_check_branch
              %413 = sbr.rel target = $region52
            $region51: #{tpu_custom_call.1} parent=43 // pred_region
              %s415 = ssub.s32 256, 1
              %s416 = sshrl.u32 %s402, 1
              // While loop
              $region53: #{tpu_custom_call.1} parent=51 // loop_pre_header
                _
              $region54: #{tpu_custom_call.1} parent=51 // loop_header
                %s418 = sphi 0, %s420
                %p419 = scmp.ge.s32.totalorder %s418, %s416
                %s423 = sphi 0, %s432
                %s424 = sphi %s391, %s435
                %s425 = sphi %s406, %s436
              $region55: #{tpu_custom_call.1} parent=51 // loop_header_branch
                %422 = sbr.rel (%p419) target = $region59
              $region56: #{tpu_custom_call.1} parent=51 // loop_body
                %v426 = vld [vmem:[%s424] sm:%s415]
                %427 = vst [vmem:[%s425] sm:%s415] %v426
                %v428 = vld [vmem:[%s424 + $0x8] sm:%s415]
                %429 = vst [vmem:[%s425 + $0x8] sm:%s415] %v428
                %s430 = sadd.s32 1, %s423
                %p431 = scmp.ge.s32.totalorder %s430, %s416
                %s432 = scalar_select %p431, 0, %s430
                %s433 = smul.u32 %s432, 16
                %s434 = smul.u32 %s432, 16
                %s435 = scalar_lea.vmem %s391, %s433 [#allocation4]
                %s436 = scalar_lea.vmem %s406, %s434
              $region57: #{tpu_custom_call.1} parent=51 // loop_footer
                %s420 = sadd.s32 %s418, 1
              $region58: #{tpu_custom_call.1} parent=51 // loop_footer_branch
                %417 = sbr.rel target = $region54
              $region59: #{tpu_custom_call.1} parent=51 // loop_exit
                _
              %s437 = sshrl.u32 %s402, 1
              %s438 = sand.u32 %s402, 1
              %s439 = smul.u32 %s437, 2
              %s440 = smul.u32 8, %s439
              %s441 = scalar_lea.vmem %s391, %s440 [#allocation4]
              %s442 = smul.u32 8, %s439
              %s443 = scalar_lea.vmem %s406, %s442
              // While loop
              $region60: #{tpu_custom_call.1} parent=51 // loop_pre_header
                _
              $region61: #{tpu_custom_call.1} parent=51 // loop_header
                %s445 = sphi 0, %s447
                %p446 = scmp.ge.s32.totalorder %s445, %s438
                %s450 = sphi 0, %s457
                %s451 = sphi %s441, %s460
                %s452 = sphi %s443, %s461
              $region62: #{tpu_custom_call.1} parent=51 // loop_header_branch
                %449 = sbr.rel (%p446) target = $region66
              $region63: #{tpu_custom_call.1} parent=51 // loop_body
                %v453 = vld [vmem:[%s451] sm:%s415]
                %454 = vst [vmem:[%s452] sm:%s415] %v453
                %s455 = sadd.s32 1, %s450
                %p456 = scmp.ge.s32.totalorder %s455, %s438
                %s457 = scalar_select %p456, 0, %s455
                %s458 = smul.u32 %s457, 8
                %s459 = smul.u32 %s457, 8
                %s460 = scalar_lea.vmem %s441, %s458 [#allocation4]
                %s461 = scalar_lea.vmem %s443, %s459
              $region64: #{tpu_custom_call.1} parent=51 // loop_footer
                %s447 = sadd.s32 %s445, 1
              $region65: #{tpu_custom_call.1} parent=51 // loop_footer_branch
                %444 = sbr.rel target = $region61
              $region66: #{tpu_custom_call.1} parent=51 // loop_exit
                _
            $region52: #{tpu_custom_call.1} parent=43 // pred_fallthru
              _
          $region44: #{tpu_custom_call.1} parent=39 // pred_fallthru
            _
          %512 = vnop
        $region40: #{tpu_custom_call.1} parent=31 // pred_fallthru
          _
        // Predicated region
        $region89: #{tpu_custom_call.1} parent=31 // pred_check
          %p513 = pneg %p129
        $region90: #{tpu_custom_call.1} parent=31 // pred_check_branch
          %515 = sbr.rel (%p513) target = $region92
        $region91: #{tpu_custom_call.1} parent=31 // pred_region
          %s516 = smul.u32 2, %s17
          %s517 = ssub.s32 5, %s516
          %p518 = scmp.lt.s32.totalorder %s517, 2
          %s519 = scalar_select %p518, %s517, 2
          %s520 = smul.u32 8, %s519
          %p521 = scmp.ne.s32.totalorder 0, %s520
          %s522 = smul.addr %s516, 8
          %s523 = scalar_lea.vmem %s4, %s522
          // Predicated region
          $region93: #{tpu_custom_call.1} parent=91 // pred_check
            %p524 = pneg %p521
          $region94: #{tpu_custom_call.1} parent=91 // pred_check_branch
            %526 = sbr.rel (%p524) target = $region96
          $region95: #{tpu_custom_call.1} parent=91 // pred_region
            // Predicated region
            $region97: #{tpu_custom_call.1} parent=95 // pred_check
              _
            $region98: #{tpu_custom_call.1} parent=95 // pred_check_branch
              %528 = sbr.rel (0) target = $region100
            $region99: #{tpu_custom_call.1} parent=95 // pred_region
              // Predicated region
              $region119: #{tpu_custom_call.1} parent=99 // pred_check
                _
              $region120: #{tpu_custom_call.1} parent=99 // pred_check_branch
                %580 = sbr.rel (0) target = $region122
              $region121: #{tpu_custom_call.1} parent=99 // pred_region
                %s581 = sshrl.u32 %s519, 1
                // While loop
                $region123: #{tpu_custom_call.1} parent=121 // loop_pre_header
                  _
                $region124: #{tpu_custom_call.1} parent=121 // loop_header
                  %s583 = sphi 0, %s585
                  %p584 = scmp.ge.s32.totalorder %s583, %s581
                  %s588 = sphi 0, %s597
                  %s589 = sphi %s395, %s600
                  %s590 = sphi %s523, %s601
                $region125: #{tpu_custom_call.1} parent=121 // loop_header_branch
                  %587 = sbr.rel (%p584) target = $region129
                $region126: #{tpu_custom_call.1} parent=121 // loop_body
                  %v591 = vld [vmem:[%s589] sm:$0xff]
                  %592 = vst [vmem:[%s590] sm:$0xff] %v591
                  %v593 = vld [vmem:[%s589 + $0x8] sm:$0xff]
                  %594 = vst [vmem:[%s590 + $0x8] sm:$0xff] %v593
                  %s595 = sadd.s32 1, %s588
                  %p596 = scmp.ge.s32.totalorder %s595, %s581
                  %s597 = scalar_select %p596, 0, %s595
                  %s598 = smul.u32 %s597, 16
                  %s599 = smul.u32 %s597, 16
                  %s600 = scalar_lea.vmem %s395, %s598 [#allocation5]
                  %s601 = scalar_lea.vmem %s523, %s599
                $region127: #{tpu_custom_call.1} parent=121 // loop_footer
                  %s585 = sadd.s32 %s583, 1
                $region128: #{tpu_custom_call.1} parent=121 // loop_footer_branch
                  %582 = sbr.rel target = $region124
                $region129: #{tpu_custom_call.1} parent=121 // loop_exit
                  _
                %s602 = sshrl.u32 %s519, 1
                %s603 = sand.u32 %s519, 1
                %s604 = smul.u32 %s602, 2
                %s605 = smul.u32 8, %s604
                %s606 = scalar_lea.vmem %s395, %s605 [#allocation5]
                %s607 = smul.u32 8, %s604
                %s608 = scalar_lea.vmem %s523, %s607
                // While loop
                $region130: #{tpu_custom_call.1} parent=121 // loop_pre_header
                  _
                $region131: #{tpu_custom_call.1} parent=121 // loop_header
                  %s610 = sphi 0, %s612
                  %p611 = scmp.ge.s32.totalorder %s610, %s603
                  %s615 = sphi 0, %s622
                  %s616 = sphi %s606, %s625
                  %s617 = sphi %s608, %s626
                $region132: #{tpu_custom_call.1} parent=121 // loop_header_branch
                  %614 = sbr.rel (%p611) target = $region136
                $region133: #{tpu_custom_call.1} parent=121 // loop_body
                  %v618 = vld [vmem:[%s616] sm:$0xff]
                  %619 = vst [vmem:[%s617] sm:$0xff] %v618
                  %s620 = sadd.s32 1, %s615
                  %p621 = scmp.ge.s32.totalorder %s620, %s603
                  %s622 = scalar_select %p621, 0, %s620
                  %s623 = smul.u32 %s622, 8
                  %s624 = smul.u32 %s622, 8
                  %s625 = scalar_lea.vmem %s606, %s623 [#allocation5]
                  %s626 = scalar_lea.vmem %s608, %s624
                $region134: #{tpu_custom_call.1} parent=121 // loop_footer
                  %s612 = sadd.s32 %s610, 1
                $region135: #{tpu_custom_call.1} parent=121 // loop_footer_branch
                  %609 = sbr.rel target = $region131
                $region136: #{tpu_custom_call.1} parent=121 // loop_exit
                  _
              $region122: #{tpu_custom_call.1} parent=99 // pred_fallthru
                _
              // Predicated region
              $region137: #{tpu_custom_call.1} parent=99 // pred_check
                _
              $region138: #{tpu_custom_call.1} parent=99 // pred_check_branch
                %628 = sbr.rel target = $region140
              $region139: #{tpu_custom_call.1} parent=99 // pred_region
                _
              $region140: #{tpu_custom_call.1} parent=99 // pred_fallthru
                _
            $region100: #{tpu_custom_call.1} parent=95 // pred_fallthru
              _
            // Predicated region
            $region101: #{tpu_custom_call.1} parent=95 // pred_check
              _
            $region102: #{tpu_custom_call.1} parent=95 // pred_check_branch
              %530 = sbr.rel target = $region104
            $region103: #{tpu_custom_call.1} parent=95 // pred_region
              %s532 = ssub.s32 256, 1
              %s533 = sshrl.u32 %s519, 1
              // While loop
              $region105: #{tpu_custom_call.1} parent=103 // loop_pre_header
                _
              $region106: #{tpu_custom_call.1} parent=103 // loop_header
                %s535 = sphi 0, %s537
                %p536 = scmp.ge.s32.totalorder %s535, %s533
                %s540 = sphi 0, %s549
                %s541 = sphi %s395, %s552
                %s542 = sphi %s523, %s553
              $region107: #{tpu_custom_call.1} parent=103 // loop_header_branch
                %539 = sbr.rel (%p536) target = $region111
              $region108: #{tpu_custom_call.1} parent=103 // loop_body
                %v543 = vld [vmem:[%s541] sm:%s532]
                %544 = vst [vmem:[%s542] sm:%s532] %v543
                %v545 = vld [vmem:[%s541 + $0x8] sm:%s532]
                %546 = vst [vmem:[%s542 + $0x8] sm:%s532] %v545
                %s547 = sadd.s32 1, %s540
                %p548 = scmp.ge.s32.totalorder %s547, %s533
                %s549 = scalar_select %p548, 0, %s547
                %s550 = smul.u32 %s549, 16
                %s551 = smul.u32 %s549, 16
                %s552 = scalar_lea.vmem %s395, %s550 [#allocation5]
                %s553 = scalar_lea.vmem %s523, %s551
              $region109: #{tpu_custom_call.1} parent=103 // loop_footer
                %s537 = sadd.s32 %s535, 1
              $region110: #{tpu_custom_call.1} parent=103 // loop_footer_branch
                %534 = sbr.rel target = $region106
              $region111: #{tpu_custom_call.1} parent=103 // loop_exit
                _
              %s554 = sshrl.u32 %s519, 1
              %s555 = sand.u32 %s519, 1
              %s556 = smul.u32 %s554, 2
              %s557 = smul.u32 8, %s556
              %s558 = scalar_lea.vmem %s395, %s557 [#allocation5]
              %s559 = smul.u32 8, %s556
              %s560 = scalar_lea.vmem %s523, %s559
              // While loop
              $region112: #{tpu_custom_call.1} parent=103 // loop_pre_header
                _
              $region113: #{tpu_custom_call.1} parent=103 // loop_header
                %s562 = sphi 0, %s564
                %p563 = scmp.ge.s32.totalorder %s562, %s555
                %s567 = sphi 0, %s574
                %s568 = sphi %s558, %s577
                %s569 = sphi %s560, %s578
              $region114: #{tpu_custom_call.1} parent=103 // loop_header_branch
                %566 = sbr.rel (%p563) target = $region118
              $region115: #{tpu_custom_call.1} parent=103 // loop_body
                %v570 = vld [vmem:[%s568] sm:%s532]
                %571 = vst [vmem:[%s569] sm:%s532] %v570
                %s572 = sadd.s32 1, %s567
                %p573 = scmp.ge.s32.totalorder %s572, %s555
                %s574 = scalar_select %p573, 0, %s572
                %s575 = smul.u32 %s574, 8
                %s576 = smul.u32 %s574, 8
                %s577 = scalar_lea.vmem %s558, %s575 [#allocation5]
                %s578 = scalar_lea.vmem %s560, %s576
              $region116: #{tpu_custom_call.1} parent=103 // loop_footer
                %s564 = sadd.s32 %s562, 1
              $region117: #{tpu_custom_call.1} parent=103 // loop_footer_branch
                %561 = sbr.rel target = $region113
              $region118: #{tpu_custom_call.1} parent=103 // loop_exit
                _
            $region104: #{tpu_custom_call.1} parent=95 // pred_fallthru
              _
          $region96: #{tpu_custom_call.1} parent=91 // pred_fallthru
            _
          %629 = vnop
        $region92: #{tpu_custom_call.1} parent=31 // pred_fallthru
          _
      $region32: #{tpu_custom_call.1} parent=5 // pred_fallthru
        _
      %p630 = scmp.le.s32.totalorder 2, %s12
      // Predicated region
      $region141: #{tpu_custom_call.1} parent=5 // pred_check
        %p631 = pneg %p630
      $region142: #{tpu_custom_call.1} parent=5 // pred_check_branch
        %633 = sbr.rel (%p631) target = $region144
      $region143: #{tpu_custom_call.1} parent=5 // pred_region
        %s634 = ssub.s32 %s12, 2
        // Predicated region
        $region145: #{tpu_custom_call.1} parent=143 // pred_check
          %p635 = pneg %p109
        $region146: #{tpu_custom_call.1} parent=143 // pred_check_branch
          %637 = sbr.rel (%p635) target = $region148
        $region147: #{tpu_custom_call.1} parent=143 // pred_region
          %s638 = sand.u32 %s94, 1
          %s639 = sand.u32 %s94, 1
          %s640 = smul.addr %s639, 16
          %s641 = scalar_lea.vmem [#allocation4], %s640
        $region148: #{tpu_custom_call.1} parent=143 // pred_fallthru
          _
        // Predicated region
        $region149: #{tpu_custom_call.1} parent=143 // pred_check
          %p642 = pneg %p135
        $region150: #{tpu_custom_call.1} parent=143 // pred_check_branch
          %644 = sbr.rel (%p642) target = $region152
        $region151: #{tpu_custom_call.1} parent=143 // pred_region
          %s645 = sand.u32 %s120, 1
          %s646 = sand.u32 %s120, 1
          %s647 = smul.addr %s646, 16
          %s648 = scalar_lea.vmem [#allocation5], %s647
        $region152: #{tpu_custom_call.1} parent=143 // pred_fallthru
          _
      $region144: #{tpu_custom_call.1} parent=5 // pred_fallthru
        _
    $region6: #{tpu_custom_call.1} parent=1 // loop_footer
      %s16 = sadd.s32 1, %s12
    $region7: #{tpu_custom_call.1} parent=1 // loop_footer_branch
      %11 = sbr.rel target = $region3
    $region8: #{tpu_custom_call.1} parent=1 // loop_exit
      _
    %649 = vsyncpa [#allocation3], 1
    %s650 = scalar_lea.sflag [#allocation3], 1
    %651 = vsyncpa %s650, 1

</llo_original>
